<compile_context>
chip_gen: v6e
topology: v6e:2x2x1
jax: 0.10.0
libtpu: 0.0.40
codegen_flags: <defaults>
</compile_context>

<pallas_src>
import jax
import jax.numpy as jnp
import numpy as np
from jax.experimental import pallas as pl
from jax.experimental.pallas import tpu as pltpu

# ---- config (mirrors BaseModel fields) -------------------------------------
BATCH = 2
FEATURE_MAP_DIMS = (64, 8, 8)   # (C, H, W) of the backbone output
HIDDEN_LAYER_SIZE = 32
NUM_CLASSES = 10
DROP_OUT_PROB = 0.1             # eval mode -> identity

LANE = 128                      # TPU lane width; output classes padded to this
MAX_BATCH_TILE = 512            # rows per grid step for large batches


def _head_kernel(h_ref, w_ref, b_ref, out_ref):
    # h_ref  : [TB, C, HW]  backbone feature tile (native dtype, e.g. bf16)
    # w_ref  : [C, NPAD]    f32 folded fc_last @ fc_logits weight (lane padded)
    # b_ref  : [1, NPAD]    f32 folded bias (lane padded)
    # out_ref: [TB, NPAD]   f32 logits (lane-dense)
    hw = h_ref.shape[-1]
    h = h_ref[...].astype(jnp.float32)            # narrow DMA; f32 math on-chip
    pooled = jnp.sum(h, axis=-1) * (1.0 / hw)     # AvgPool2d + squeeze -> [TB, C]
    out_ref[...] = (
        jnp.dot(pooled, w_ref[...], preferred_element_type=jnp.float32)
        + b_ref[...]
    )


def prepare_head_params(w1, b1, w2, b2):
    """One-time weight prep (call at model-load time).

    w1: [HIDDEN, C], b1: [HIDDEN], w2: [NUM_CLASSES, HIDDEN], b2: [NUM_CLASSES]
    (PyTorch nn.Linear layout).  Returns (w_pad, b_pad, num_classes) where
    w_pad: [C, NPAD] folds fc_last + fc_logits (dropout = eval identity) and
    b_pad: [1, NPAD] is the folded bias, both zero-padded to NPAD lanes.
    """
    w1 = jnp.asarray(w1, jnp.float32)
    b1 = jnp.asarray(b1, jnp.float32)
    w2 = jnp.asarray(w2, jnp.float32)
    b2 = jnp.asarray(b2, jnp.float32)
    num_classes = w2.shape[0]
    c = w1.shape[1]
    n_pad = pl.cdiv(num_classes, LANE) * LANE

    # Fold the two bias-linear layers (valid: no activation, eval dropout).
    w_fold = w1.T @ w2.T                       # [C, NUM_CLASSES]
    b_fold = b1 @ w2.T + b2                    # [NUM_CLASSES]

    # Zero-pad classes to a lane-dense width.
    w_pad = jnp.zeros((c, n_pad), jnp.float32).at[:, :num_classes].set(w_fold)
    b_pad = jnp.zeros((1, n_pad), jnp.float32).at[:, :num_classes].set(b_fold)
    return w_pad, b_pad, num_classes


def image_classifier_head(h_nchw, w_pad, b_pad, num_classes):
    """h_nchw: [B, C, H, W] backbone feature map (any float dtype, e.g. bf16).
    Returns logits [B, num_classes] in f32."""
    B, C, H, W = h_nchw.shape
    hw = H * W
    n_pad = w_pad.shape[1]
    h3 = h_nchw.reshape(B, C, hw)              # keep native dtype (no f32 cast)

    # Single block at small B (tb == B, full-extent dims are always legal);
    # 512-row tiles (multiple of 8 sublanes) for large B.
    tb = B if B <= MAX_BATCH_TILE else MAX_BATCH_TILE
    grid = (pl.cdiv(B, tb),)

    out = pl.pallas_call(
        _head_kernel,
        out_shape=jax.ShapeDtypeStruct((B, n_pad), jnp.float32),
        grid=grid,
        in_specs=[
            pl.BlockSpec((tb, C, hw), lambda i: (i, 0, 0)),   # feature tile
            pl.BlockSpec((C, n_pad), lambda i: (0, 0)),       # folded weight (resident)
            pl.BlockSpec((1, n_pad), lambda i: (0, 0)),       # folded bias (resident)
        ],
        out_specs=pl.BlockSpec((tb, n_pad), lambda i: (i, 0)),
        compiler_params=pltpu.CompilerParams(
            dimension_semantics=("parallel",),     # megacore shards batch tiles (v7x)
            vmem_limit_bytes=32 * 1024 * 1024,     # explicit cap, safe on v5e..v7x
        ),
    )(h3, w_pad, b_pad)

    return out[:, :num_classes]                # drop lane padding (static slice)


if __name__ == "__main__":
    C, H, W = FEATURE_MAP_DIMS
    key = jax.random.PRNGKey(0)
    k_h, k_w1, k_b1, k_w2, k_b2 = jax.random.split(key, 5)

    # Deterministic synthetic feature map (native backbone dtype: bf16) + params.
    h = jax.random.normal(k_h, (BATCH, C, H, W), dtype=jnp.float32).astype(jnp.bfloat16)
    w1 = jax.random.normal(k_w1, (HIDDEN_LAYER_SIZE, C), dtype=jnp.float32) * 0.05
    b1 = jax.random.normal(k_b1, (HIDDEN_LAYER_SIZE,), dtype=jnp.float32) * 0.05
    w2 = jax.random.normal(k_w2, (NUM_CLASSES, HIDDEN_LAYER_SIZE), dtype=jnp.float32) * 0.05
    b2 = jax.random.normal(k_b2, (NUM_CLASSES,), dtype=jnp.float32) * 0.05

    # One-time weight prep (model-load time), then the kernel call.
    w_pad, b_pad, n_cls = prepare_head_params(w1, b1, w2, b2)
    logits = jax.block_until_ready(image_classifier_head(h, w_pad, b_pad, n_cls))

    # Pure-JAX reference of the ORIGINAL (unfolded) head on the same
    # bf16-quantized feature map, computed in f32.
    h32 = h.astype(jnp.float32)
    pooled_ref = jnp.mean(h32, axis=(2, 3))                   # AvgPool2d + squeeze
    hidden_ref = pooled_ref @ w1.T + b1                       # fc_last (+ eval dropout)
    logits_ref = hidden_ref @ w2.T + b2                       # fc_logits

    assert logits.shape == (BATCH, NUM_CLASSES)
    np.testing.assert_allclose(np.asarray(logits), np.asarray(logits_ref),
                               rtol=5e-4, atol=2e-5)
    print("KERNEL_OK")
</pallas_src>

<mosaic_0001>
module attributes {stable_mosaic.version = 11 : i64} {
  func.func @_head_kernel(%arg0: i32, %arg1: memref<2x64x64xbf16, #tpu.memory_space<vmem>>, %arg2: memref<64x128xf32, #tpu.memory_space<vmem>>, %arg3: memref<1x128xf32, #tpu.memory_space<vmem>>, %arg4: memref<2x128xf32, #tpu.memory_space<vmem>>) attributes {dimension_semantics = [#tpu.dimension_semantics<parallel>], iteration_bounds = array<i64: 1>, scalar_prefetch = 0 : i64, scratch_operands = 0 : i64, tpu.core_type = #tpu.core_type<tc>, window_params = [{transform_indices = @transform_0, window_bounds = array<i64: 2, 64, 64>}, {pipeline_mode = #tpu.pipeline_mode<synchronous>, transform_indices = @transform_1, window_bounds = array<i64: 64, 128>}, {pipeline_mode = #tpu.pipeline_mode<synchronous>, transform_indices = @transform_2, window_bounds = array<i64: 1, 128>}, {transform_indices = @transform_3, window_bounds = array<i64: 2, 128>}]} {
    %c0 = arith.constant 0 : index
    %c0_0 = arith.constant 0 : index
    %c0_1 = arith.constant 0 : index
    %0 = vector.load %arg1[%c0, %c0_0, %c0_1] : memref<2x64x64xbf16, #tpu.memory_space<vmem>>, vector<2x64x64xbf16>
    %1 = arith.extf %0 : vector<2x64x64xbf16> to vector<2x64x64xf32>
    %cst = arith.constant dense<0.000000e+00> : vector<2x64xf32>
    %2 = vector.multi_reduction <add>, %1, %cst [2] : vector<2x64x64xf32> to vector<2x64xf32>
    %cst_2 = arith.constant 1.562500e-02 : f32
    %3 = vector.broadcast %cst_2 : f32 to vector<2x64xf32>
    %4 = arith.mulf %2, %3 : vector<2x64xf32>
    %c0_3 = arith.constant 0 : index
    %c0_4 = arith.constant 0 : index
    %5 = vector.load %arg2[%c0_3, %c0_4] : memref<64x128xf32, #tpu.memory_space<vmem>>, vector<64x128xf32>
    %cst_5 = arith.constant dense<0.000000e+00> : vector<2x128xf32>
    %6 = tpu.matmul %4, %5, %cst_5 {dimension_numbers = #tpu.dot_dimension_numbers<[1], [0], [0], [1], [0, 0, 1, 1], [], []>} : vector<2x64xf32>, vector<64x128xf32>, vector<2x128xf32> -> vector<2x128xf32>
    %c0_6 = arith.constant 0 : index
    %c0_7 = arith.constant 0 : index
    %7 = vector.load %arg3[%c0_6, %c0_7] : memref<1x128xf32, #tpu.memory_space<vmem>>, vector<1x128xf32>
    %8 = vector.broadcast %7 : vector<1x128xf32> to vector<2x128xf32>
    %9 = arith.addf %6, %8 : vector<2x128xf32>
    %c0_8 = arith.constant 0 : index
    %c0_9 = arith.constant 0 : index
    %10 = vector.load %arg4[%c0_8, %c0_9] : memref<2x128xf32, #tpu.memory_space<vmem>>, vector<2x128xf32>
    tpu.vector_store %arg4[%c0_8, %c0_9], %9 {strides = array<i32>} : memref<2x128xf32, #tpu.memory_space<vmem>>, vector<2x128xf32>,
    return
  }
  func.func @transform_0(%arg0: i32) -> (i32, i32, i32) {
    %c0_i32 = arith.constant 0 : i32
    %c0_i32_0 = arith.constant 0 : i32
    %c0_i32_1 = arith.constant 0 : i32
    return %arg0, %c0_i32, %c0_i32_0 : i32, i32, i32
  }
  func.func @transform_1(%arg0: i32) -> (i32, i32) {
    %c0_i32 = arith.constant 0 : i32
    %c0_i32_0 = arith.constant 0 : i32
    %c0_i32_1 = arith.constant 0 : i32
    return %c0_i32, %c0_i32_0 : i32, i32
  }
  func.func @transform_2(%arg0: i32) -> (i32, i32) {
    %c0_i32 = arith.constant 0 : i32
    %c0_i32_0 = arith.constant 0 : i32
    %c0_i32_1 = arith.constant 0 : i32
    return %c0_i32, %c0_i32_0 : i32, i32
  }
  func.func @transform_3(%arg0: i32) -> (i32, i32) {
    %c0_i32 = arith.constant 0 : i32
    %c0_i32_0 = arith.constant 0 : i32
    return %arg0, %c0_i32 : i32, i32
  }
}

</mosaic_0001>

<llo_original>
// kernel: tpu_custom_call.1
$region0: #{tpu_custom_call.1}
  #allocation0 [shape = 'u32[]', space=smem, size = 0x4, offset = 0x4, fixed_abs, tag = 'smem constant byte address 0x4 - core index']
  #allocation1 [shape = 'u32[144,128]{1,0:T(1,128)}', space=vmem, size = 0x12000, scoped, tag = 'internal scratch']
  %s0 = inlined_call_operand.hbm [shape: bf16[2,64,64], index: 0, kind: input, shape index: {}]
  %s1 = inlined_call_operand.hbm [shape: f32[64,128], index: 1, kind: input, shape index: {}]
  %s2 = inlined_call_operand.vmem [shape: f32[1,128], index: 2, kind: input, shape index: {}]
  %s3 = inlined_call_operand.hbm [shape: f32[2,128], index: 3, kind: output, shape index: {}]
  %s4 = sld [smem:[#allocation0]]
  $region30: #{tpu_custom_call.1} parent=0
    _
  %s6 = ssub.s32 1, %s4
  %s7 = scalar_select 0, %s6, %s4
  $region1: #{tpu_custom_call.1} parent=0
    #allocation2 [shape = 'u8[32768]{0}', space=vmem, size = 0x8000, scoped, tag = 'input window, operand 0, single buffered']
    #allocation3 [shape = 's32[1]{0}', space=sflag, size = 0x4, scoped, tag = 'scoped memory for tpu_custom_call.1']
    #allocation4 [shape = 's32[1]{0}', space=sflag, size = 0x4, scoped, tag = 'scoped memory for tpu_custom_call.1']
    #allocation5 [shape = 'u8[32768]{0}', space=vmem, size = 0x8000, scoped, tag = 'input window, operand 1, single buffered']
    #allocation6 [shape = 's32[1]{0}', space=sflag, size = 0x4, scoped, tag = 'scoped memory for tpu_custom_call.1']
    #allocation7 [shape = 'u8[1024]{0}', space=vmem, size = 0x400, scoped, tag = 'output window, operand 0, single buffered']
    %8 = vsyncpa [#allocation3], 0
    %9 = vsyncpa [#allocation6], 0
    %10 = vsyncpa [#allocation4], 0
    // Predicated region
    $region2: #{tpu_custom_call.1} parent=1 // pred_check
      _
    $region3: #{tpu_custom_call.1} parent=1 // pred_check_branch
      %12 = sbr.rel (0) target = $region5
    $region4: #{tpu_custom_call.1} parent=1 // pred_region
      %s14 = ssub.s32 1024, 1024
      %15 = vsyncadd [#allocation3], %s14
      %s16 = sshll.u32 [#allocation2], 4
      %s17 = int_to_ptr.vmem [resolvable:$true] %s16
      %22 = dma.hbm_to_vmem [thread:$0]  %s0, 1024, %s17, [#allocation3], 64, 64, 4
    $region5: #{tpu_custom_call.1} parent=1 // pred_fallthru
      _
    // Predicated region
    $region6: #{tpu_custom_call.1} parent=1 // pred_check
      _
    $region7: #{tpu_custom_call.1} parent=1 // pred_check_branch
      %24 = sbr.rel (0) target = $region9
    $region8: #{tpu_custom_call.1} parent=1 // pred_region
      %s26 = ssub.s32 1024, 1024
      %27 = vsyncadd [#allocation6], %s26
      %s28 = sshll.u32 [#allocation5], 4
      %s29 = int_to_ptr.vmem [resolvable:$true] %s28
      %34 = dma.hbm_to_vmem [thread:$0]  %s1, 1024, %s29, [#allocation6], 128, 128, 8
    $region9: #{tpu_custom_call.1} parent=1 // pred_fallthru
      _
    // Predicated region
    $region10: #{tpu_custom_call.1} parent=1 // pred_check
      _
    $region11: #{tpu_custom_call.1} parent=1 // pred_check_branch
      %36 = sbr.rel (0) target = $region13
    $region12: #{tpu_custom_call.1} parent=1 // pred_region
      _
    $region13: #{tpu_custom_call.1} parent=1 // pred_fallthru
      _
    // Predicated region
    $region14: #{tpu_custom_call.1} parent=1 // pred_check
      _
    $region15: #{tpu_custom_call.1} parent=1 // pred_check_branch
      %38 = sbr.rel (0) target = $region17
    $region16: #{tpu_custom_call.1} parent=1 // pred_region
      %39 = dma.done [#allocation3], 1024
    $region17: #{tpu_custom_call.1} parent=1 // pred_fallthru
      _
    // Predicated region
    $region18: #{tpu_custom_call.1} parent=1 // pred_check
      _
    $region19: #{tpu_custom_call.1} parent=1 // pred_check_branch
      %41 = sbr.rel (0) target = $region21
    $region20: #{tpu_custom_call.1} parent=1 // pred_region
      %42 = dma.done [#allocation6], 1024
    $region21: #{tpu_custom_call.1} parent=1 // pred_fallthru
      _
    %v43 = vld [vmem:[#allocation2] sm:$0xf]
    %v44 = vld [vmem:[#allocation2 + $0x4] sm:$0xf]
    %v45 = vld [vmem:[#allocation2 + $0x8] sm:$0xf]
    %v46 = vld [vmem:[#allocation2 + $0xc] sm:$0xf]
    %v47 = vld [vmem:[#allocation2 + $0x10] sm:$0xf]
    %v48 = vld [vmem:[#allocation2 + $0x14] sm:$0xf]
    %v49 = vld [vmem:[#allocation2 + $0x18] sm:$0xf]
    %v50 = vld [vmem:[#allocation2 + $0x1c] sm:$0xf]
    %v51 = vld [vmem:[#allocation2 + $0x20] sm:$0xf]
    %v52 = vld [vmem:[#allocation2 + $0x24] sm:$0xf]
    %v53 = vld [vmem:[#allocation2 + $0x28] sm:$0xf]
    %v54 = vld [vmem:[#allocation2 + $0x2c] sm:$0xf]
    %v55 = vld [vmem:[#allocation2 + $0x30] sm:$0xf]
    %v56 = vld [vmem:[#allocation2 + $0x34] sm:$0xf]
    %v57 = vld [vmem:[#allocation2 + $0x38] sm:$0xf]
    %v58 = vld [vmem:[#allocation2 + $0x3c] sm:$0xf]
    %v59 = vunpack.c.l.bf16 %v43
    %v60 = vunpack.c.l.bf16 %v44
    %v61 = vunpack.c.l.bf16 %v45
    %v62 = vunpack.c.l.bf16 %v46
    %v63 = vunpack.c.l.bf16 %v47
    %v64 = vunpack.c.l.bf16 %v48
    %v65 = vunpack.c.l.bf16 %v49
    %v66 = vunpack.c.l.bf16 %v50
    %v67 = vunpack.c.l.bf16 %v51
    %v68 = vunpack.c.l.bf16 %v52
    %v69 = vunpack.c.l.bf16 %v53
    %v70 = vunpack.c.l.bf16 %v54
    %v71 = vunpack.c.l.bf16 %v55
    %v72 = vunpack.c.l.bf16 %v56
    %v73 = vunpack.c.l.bf16 %v57
    %v74 = vunpack.c.l.bf16 %v58
    %vm75 = vcmask 523264
    %v76 = vsel %vm75, %v59, 0.0
    %77 = vadd.xlane.f32.xlu0 %v76
    %v78 = vpop.xlane.xlu0 %77
    %v79 = vsel %vm75, %v60, 0.0
    %80 = vadd.xlane.f32.xlu0 %v79
    %v81 = vpop.xlane.xlu0 %80
    %v82 = vsel %vm75, %v61, 0.0
    %83 = vadd.xlane.f32.xlu0 %v82
    %v84 = vpop.xlane.xlu0 %83
    %v85 = vsel %vm75, %v62, 0.0
    %86 = vadd.xlane.f32.xlu0 %v85
    %v87 = vpop.xlane.xlu0 %86
    %v88 = vsel %vm75, %v63, 0.0
    %89 = vadd.xlane.f32.xlu0 %v88
    %v90 = vpop.xlane.xlu0 %89
    %v91 = vsel %vm75, %v64, 0.0
    %92 = vadd.xlane.f32.xlu0 %v91
    %v93 = vpop.xlane.xlu0 %92
    %v94 = vsel %vm75, %v65, 0.0
    %95 = vadd.xlane.f32.xlu0 %v94
    %v96 = vpop.xlane.xlu0 %95
    %v97 = vsel %vm75, %v66, 0.0
    %98 = vadd.xlane.f32.xlu0 %v97
    %v99 = vpop.xlane.xlu0 %98
    %v100 = vsel %vm75, %v67, 0.0
    %101 = vadd.xlane.f32.xlu0 %v100
    %v102 = vpop.xlane.xlu0 %101
    %v103 = vsel %vm75, %v68, 0.0
    %104 = vadd.xlane.f32.xlu0 %v103
    %v105 = vpop.xlane.xlu0 %104
    %v106 = vsel %vm75, %v69, 0.0
    %107 = vadd.xlane.f32.xlu0 %v106
    %v108 = vpop.xlane.xlu0 %107
    %v109 = vsel %vm75, %v70, 0.0
    %110 = vadd.xlane.f32.xlu0 %v109
    %v111 = vpop.xlane.xlu0 %110
    %v112 = vsel %vm75, %v71, 0.0
    %113 = vadd.xlane.f32.xlu0 %v112
    %v114 = vpop.xlane.xlu0 %113
    %v115 = vsel %vm75, %v72, 0.0
    %116 = vadd.xlane.f32.xlu0 %v115
    %v117 = vpop.xlane.xlu0 %116
    %v118 = vsel %vm75, %v73, 0.0
    %119 = vadd.xlane.f32.xlu0 %v118
    %v120 = vpop.xlane.xlu0 %119
    %v121 = vsel %vm75, %v74, 0.0
    %122 = vadd.xlane.f32.xlu0 %v121
    %v123 = vpop.xlane.xlu0 %122
    %v124 = vmul.f32 %v78, 0.015625
    %v125 = vmul.f32 %v81, 0.015625
    %v126 = vmul.f32 %v84, 0.015625
    %v127 = vmul.f32 %v87, 0.015625
    %v128 = vmul.f32 %v90, 0.015625
    %v129 = vmul.f32 %v93, 0.015625
    %v130 = vmul.f32 %v96, 0.015625
    %v131 = vmul.f32 %v99, 0.015625
    %v132 = vmul.f32 %v102, 0.015625
    %v133 = vmul.f32 %v105, 0.015625
    %v134 = vmul.f32 %v108, 0.015625
    %v135 = vmul.f32 %v111, 0.015625
    %v136 = vmul.f32 %v114, 0.015625
    %v137 = vmul.f32 %v117, 0.015625
    %v138 = vmul.f32 %v120, 0.015625
    %v139 = vmul.f32 %v123, 0.015625
    %v140 = vld [vmem:[#allocation5] sm:$0xff]
    %v141 = vld [vmem:[#allocation5 + $0x8] sm:$0xff]
    %v142 = vld [vmem:[#allocation5 + $0x10] sm:$0xff]
    %v143 = vld [vmem:[#allocation5 + $0x18] sm:$0xff]
    %v144 = vld [vmem:[#allocation5 + $0x20] sm:$0xff]
    %v145 = vld [vmem:[#allocation5 + $0x28] sm:$0xff]
    %v146 = vld [vmem:[#allocation5 + $0x30] sm:$0xff]
    %v147 = vld [vmem:[#allocation5 + $0x38] sm:$0xff]
    %v148 = vld [vmem:[%s2] sm:$0x1]
    %v150 = vlaneseq
    %v151 = vshrl.u32 %v150, 7
    %v152 = vsub.s32 0, %v151
    %v153 = vrot.slane %v148, %v152
    %v171 = vlaneseq
    %v172 = vand.u32 %v171, 127
    %v173 = vlaneseq
    %v174 = vshrl.u32 %v173, 7
    %v175 = vsub.s32 %v172, %v174
    %v176 = vrot.slane %v124, %v175
    %v177 = vadd.s32 %v172, 4294967288
    %v178 = vlaneseq
    %v179 = vshrl.u32 %v178, 7
    %v180 = vsub.s32 %v177, %v179
    %v181 = vrot.slane %v125, %v180
    %vm182 = vcmask 130112
    %v183 = vsel %vm182, %v181, %v176
    %v184 = vadd.s32 %v172, 4294967280
    %v185 = vlaneseq
    %v186 = vshrl.u32 %v185, 7
    %v187 = vsub.s32 %v184, %v186
    %v188 = vrot.slane %v126, %v187
    %vm189 = vcmask 195712
    %v190 = vsel %vm189, %v188, %v183
    %v191 = vadd.s32 %v172, 4294967272
    %v192 = vlaneseq
    %v193 = vshrl.u32 %v192, 7
    %v194 = vsub.s32 %v191, %v193
    %v195 = vrot.slane %v127, %v194
    %vm196 = vcmask 261312
    %v197 = vsel %vm196, %v195, %v190
    %v198 = vadd.s32 %v172, 4294967264
    %v199 = vlaneseq
    %v200 = vshrl.u32 %v199, 7
    %v201 = vsub.s32 %v198, %v200
    %v202 = vrot.slane %v128, %v201
    %vm203 = vcmask 326912
    %v204 = vsel %vm203, %v202, %v197
    %v205 = vadd.s32 %v172, 4294967256
    %v206 = vlaneseq
    %v207 = vshrl.u32 %v206, 7
    %v208 = vsub.s32 %v205, %v207
    %v209 = vrot.slane %v129, %v208
    %vm210 = vcmask 392512
    %v211 = vsel %vm210, %v209, %v204
    %v212 = vadd.s32 %v172, 4294967248
    %v213 = vlaneseq
    %v214 = vshrl.u32 %v213, 7
    %v215 = vsub.s32 %v212, %v214
    %v216 = vrot.slane %v130, %v215
    %vm217 = vcmask 458112
    %v218 = vsel %vm217, %v216, %v211
    %v219 = vadd.s32 %v172, 4294967240
    %v220 = vlaneseq
    %v221 = vshrl.u32 %v220, 7
    %v222 = vsub.s32 %v219, %v221
    %v223 = vrot.slane %v131, %v222
    %vm224 = vcmask 523712
    %v225 = vsel %vm224, %v223, %v218
    %v226 = vlaneseq
    %v227 = vshrl.u32 %v226, 7
    %v228 = vsub.s32 %v172, %v227
    %v229 = vrot.slane %v132, %v228
    %v230 = vlaneseq
    %v231 = vshrl.u32 %v230, 7
    %v232 = vsub.s32 %v177, %v231
    %v233 = vrot.slane %v133, %v232
    %v234 = vsel %vm182, %v233, %v229
    %v235 = vlaneseq
    %v236 = vshrl.u32 %v235, 7
    %v237 = vsub.s32 %v184, %v236
    %v238 = vrot.slane %v134, %v237
    %v239 = vsel %vm189, %v238, %v234
    %v240 = vlaneseq
    %v241 = vshrl.u32 %v240, 7
    %v242 = vsub.s32 %v191, %v241
    %v243 = vrot.slane %v135, %v242
    %v244 = vsel %vm196, %v243, %v239
    %v245 = vlaneseq
    %v246 = vshrl.u32 %v245, 7
    %v247 = vsub.s32 %v198, %v246
    %v248 = vrot.slane %v136, %v247
    %v249 = vsel %vm203, %v248, %v244
    %v250 = vlaneseq
    %v251 = vshrl.u32 %v250, 7
    %v252 = vsub.s32 %v205, %v251
    %v253 = vrot.slane %v137, %v252
    %v254 = vsel %vm210, %v253, %v249
    %v255 = vlaneseq
    %v256 = vshrl.u32 %v255, 7
    %v257 = vsub.s32 %v212, %v256
    %v258 = vrot.slane %v138, %v257
    %v259 = vsel %vm217, %v258, %v254
    %v260 = vlaneseq
    %v261 = vshrl.u32 %v260, 7
    %v262 = vsub.s32 %v219, %v261
    %v263 = vrot.slane %v139, %v262
    %v264 = vsel %vm224, %v263, %v259
    %vm265 = vcmask 1041409
    %v266 = vsel %vm265, %v264, %v225
    %v267 = vsel %vm75, %v266, 0
    %269 = vmatprep.subr.mxu0 0.0
    %270 = vmatpush1.msra.mxu0 0.0
    %271 = vmatprep.subr.mxu0 0.0
    %272 = vmatpush1.msra.mxu0 0.0
    %273 = vmatprep.subr.mxu0 0.0
    %274 = vmatpush1.msra.mxu0 0.0
    %275 = vmatprep.subr.mxu0 0.0
    %276 = vmatpush1.msra.mxu0 0.0
    %277 = vmatprep.subr.mxu0 0.0
    %278 = vmatpush1.msra.mxu0 0.0
    %279 = vmatprep.subr.mxu0 0.0
    %280 = vmatpush1.msra.mxu0 0.0
    %281 = vmatprep.subr.mxu0 0.0
    %282 = vmatpush1.msra.mxu0 0.0
    %283 = vmatprep.subr.mxu0 0.0
    %284 = vmatpush1.msra.mxu0 0.0
    %285 = vmatprep.subr.mxu0 0.0
    %286 = vmatpush1.msra.mxu0 %v147
    %287 = vmatprep.subr.mxu0 0.0
    %288 = vmatpush1.msra.mxu0 %v146
    %289 = vmatprep.subr.mxu0 0.0
    %290 = vmatpush1.msra.mxu0 %v145
    %291 = vmatprep.subr.mxu0 0.0
    %292 = vmatpush1.msra.mxu0 %v144
    %293 = vmatprep.subr.mxu0 0.0
    %294 = vmatpush1.msra.mxu0 %v143
    %295 = vmatprep.subr.mxu0 0.0
    %296 = vmatpush1.msra.mxu0 %v142
    %297 = vmatprep.subr.mxu0 0.0
    %298 = vmatpush1.msra.mxu0 %v141
    %299 = vmatprep.subr.mxu0 0.0
    %300 = vmatpush1.msra.mxu0 %v140
    %301 = vmatprep.subr.mxu0 0.0
    %302 = vmatpush2.msra.mxu0 0.0
    %303 = vmatprep.subr.mxu0 0.0
    %304 = vmatpush2.msra.mxu0 0.0
    %305 = vmatprep.subr.mxu0 0.0
    %306 = vmatpush2.msra.mxu0 0.0
    %307 = vmatprep.subr.mxu0 0.0
    %308 = vmatpush2.msra.mxu0 0.0
    %309 = vmatprep.subr.mxu0 0.0
    %310 = vmatpush2.msra.mxu0 0.0
    %311 = vmatprep.subr.mxu0 0.0
    %312 = vmatpush2.msra.mxu0 0.0
    %313 = vmatprep.subr.mxu0 0.0
    %314 = vmatpush2.msra.mxu0 0.0
    %315 = vmatprep.subr.mxu0 0.0
    %316 = vmatpush2.msra.mxu0 0.0
    %317 = vmatprep.subr.mxu0 0.0
    %318 = vmatpush2.msra.mxu0 0.0
    %319 = vmatprep.subr.mxu0 0.0
    %320 = vmatpush2.msra.mxu0 0.0
    %321 = vmatprep.subr.mxu0 0.0
    %322 = vmatpush2.msra.mxu0 0.0
    %323 = vmatprep.subr.mxu0 0.0
    %324 = vmatpush2.msra.mxu0 0.0
    %325 = vmatprep.subr.mxu0 0.0
    %326 = vmatpush2.msra.mxu0 0.0
    %327 = vmatprep.subr.mxu0 0.0
    %328 = vmatpush2.msra.mxu0 0.0
    %329 = vmatprep.subr.mxu0 0.0
    %330 = vmatpush2.msra.mxu0 0.0
    %331 = vmatprep.subr.mxu0 0.0
    %332 = vmatpush2.msra.mxu0 0.0
    %333 = vmatprep.mubr.f32.mxu0 0.0
    %334 = vmatmul.mubr.f32.gmra.mxu0 %v267
    %v335 = vpop.f32.mrf.mxu0
    %v336 = vadd.f32 %v153, %v335
    %v337 = vpop.f32.mrf.mxu0
    %338 = vdwg.mxu0
    %339 = vst [vmem:[#allocation7] sm:$0x3] %v336
    // Predicated region
    $region22: #{tpu_custom_call.1} parent=1 // pred_check
      _
    $region23: #{tpu_custom_call.1} parent=1 // pred_check_branch
      %341 = sbr.rel (0) target = $region25
    $region24: #{tpu_custom_call.1} parent=1 // pred_region
      %s343 = ssub.s32 32, 32
      %344 = vsyncadd [#allocation4], %s343
      %s346 = sshll.u32 [#allocation7], 4
      %s347 = int_to_ptr.vmem [resolvable:$true] %s346
      %349 = dma.vmem_to_hbm [thread:$0]  %s347, 32, %s3, [#allocation4]
    $region25: #{tpu_custom_call.1} parent=1 // pred_fallthru
      _
    // Predicated region
    $region26: #{tpu_custom_call.1} parent=1 // pred_check
      _
    $region27: #{tpu_custom_call.1} parent=1 // pred_check_branch
      %351 = sbr.rel (0) target = $region29
    $region28: #{tpu_custom_call.1} parent=1 // pred_region
      %352 = dma.done [#allocation4], 32
    $region29: #{tpu_custom_call.1} parent=1 // pred_fallthru
      _
    %353 = vsyncpa [#allocation3], 1
    %354 = vsyncpa [#allocation6], 1
    %355 = vsyncpa [#allocation4], 1

</llo_original>
